<compile_context>
chip_gen: v7x
topology: tpu7x:2x2x1
jax: 0.10.0
libtpu: 0.0.40
codegen_flags: <defaults>
</compile_context>

<pallas_src>
import functools

import jax
import jax.numpy as jnp
from jax.experimental import pallas as pl
from jax.experimental.pallas import tpu as pltpu

SCALE_WEIGHT = 0.5 ** 0.5


def _stacked_gated_conv_kernel(x_ref, w_ref, b_ref, y_ref, xpad_ref, *,
                               num_layers, width, pad, seq_len, channels,
                               batch_block, matmul_dtype):
    """All StackedCNN layers for `batch_block` batch rows, fused.

    x_ref   : (bb, T, C)            input block (channels-last)
    w_ref   : (L, width*C, 2C)      per-layer im2col conv weights (weight-normed)
    b_ref   : (L, 1, 2C)            per-layer biases
    y_ref   : (bb, T, C)            output block
    xpad_ref: (bb*(T+2*pad), C)     VMEM activation scratch with zero halos;
                                    stays resident across the in-kernel layers
    """
    T, C, bb = seq_len, channels, batch_block
    P = T + 2 * pad                          # padded rows per batch element

    # Load input into the zero-haloed activation scratch.  Only the halo rows
    # are zeroed (body rows get overwritten), and this happens every grid step
    # so it is correct under megacore sharding / scratch revisits.
    for r in range(bb):
        base = r * P
        xpad_ref[base:base + pad, :] = jnp.zeros((pad, C), jnp.float32)
        xpad_ref[base + pad + T:base + P, :] = jnp.zeros((pad, C), jnp.float32)
        xpad_ref[base + pad:base + pad + T, :] = x_ref[r].astype(jnp.float32)

    for layer in range(num_layers):          # static unroll; L is small
        # im2col: every tap is a static slice of the padded scratch.  Rows of
        # all batch_block elements are stacked along M so each layer is a
        # single (bb*T, width*C) @ (width*C, 2C) MXU matmul.
        xs_rows, res_rows = [], []
        for r in range(bb):
            base = r * P
            cols = [xpad_ref[base + k:base + k + T, :] for k in range(width)]
            res_rows.append(cols[pad])                    # residual input x
            xs_rows.append(jnp.concatenate(cols, axis=-1))
        xs = xs_rows[0] if bb == 1 else jnp.concatenate(xs_rows, axis=0)
        x_res = res_rows[0] if bb == 1 else jnp.concatenate(res_rows, axis=0)

        # Single MXU matmul per layer for out||gate, f32 accumulation.
        acc = jnp.dot(xs.astype(matmul_dtype),
                      w_ref[layer].astype(matmul_dtype),
                      preferred_element_type=jnp.float32)
        acc = acc + b_ref[layer].astype(jnp.float32)      # (bb*T, 2C)

        out, gate = acc[:, :C], acc[:, C:]
        # GLU gate + residual + sqrt(0.5) scale, all f32 (VPU + EUP sigmoid).
        y = (x_res + out * jax.nn.sigmoid(gate)) * SCALE_WEIGHT

        if layer + 1 < num_layers:
            for r in range(bb):
                base = r * P
                xpad_ref[base + pad:base + pad + T, :] = y[r * T:(r + 1) * T, :]
        else:
            # TODO(synk): C=32 < 128 lanes -> masked partial stores; lane-dense
            # packing would need the channel dim to be a multiple of 128.
            for r in range(bb):
                y_ref[r] = y[r * T:(r + 1) * T, :].astype(y_ref.dtype)


def _auto_batch_block(batch, seq_len):
    """Batch rows per grid step: aim for >=128 MXU rows per matmul while
    keeping at least two grid steps (v7x megacore) when the batch allows it."""
    if batch <= 1:
        return 1
    target = max(1, pl.cdiv(128, seq_len))
    bb = min(target, max(1, batch // 2))
    while batch % bb:
        bb -= 1
    return max(bb, 1)


def stacked_cnn_pallas(x_btc, w_stacked, b_stacked, *, width,
                       batch_block=None, matmul_dtype=jnp.float32):
    """x_btc: (B, T, C) -> (B, T, C); runs ALL layers in one pallas_call."""
    B, T, C = x_btc.shape
    L = w_stacked.shape[0]
    pad = width // 2
    bb = _auto_batch_block(B, T) if batch_block is None else batch_block
    assert B % bb == 0, (B, bb)
    kernel = functools.partial(
        _stacked_gated_conv_kernel, num_layers=L, width=width, pad=pad,
        seq_len=T, channels=C, batch_block=bb, matmul_dtype=matmul_dtype)
    return pl.pallas_call(
        kernel,
        out_shape=jax.ShapeDtypeStruct((B, T, C), x_btc.dtype),
        grid=(B // bb,),
        in_specs=[
            pl.BlockSpec((bb, T, C), lambda b: (b, 0, 0)),
            pl.BlockSpec((L, width * C, 2 * C), lambda b: (0, 0, 0)),
            pl.BlockSpec((L, 1, 2 * C), lambda b: (0, 0, 0)),
        ],
        out_specs=pl.BlockSpec((bb, T, C), lambda b: (b, 0, 0)),
        scratch_shapes=[pltpu.VMEM((bb * (T + 2 * pad), C), jnp.float32)],
        compiler_params=pltpu.CompilerParams(
            dimension_semantics=("parallel",)),   # keeps both v7x TCs busy
    )(x_btc, w_stacked, b_stacked)


def init_stacked_cnn_params(key, num_layers, input_size, width=3, dropout=0.2):
    """Deterministic synthetic parameters matching the PyTorch module shapes.

    Per layer: V (2C, C, width, 1) xavier-uniform with gain (4*(1-p))**0.5,
               g (2C,) positive scales, bias (2C,).
    Effective conv weight = g * V / ||V||_(per out-channel)  (weight norm).
    """
    C = input_size
    gain = (4.0 * (1.0 - dropout)) ** 0.5
    fan_in = C * width * 1
    fan_out = 2 * C * width * 1
    bound = gain * (6.0 / (fan_in + fan_out)) ** 0.5

    params = []
    for _ in range(num_layers):
        key, kv, kg, kb = jax.random.split(key, 4)
        v = jax.random.uniform(kv, (2 * C, C, width, 1), jnp.float32, -bound, bound)
        g = 0.5 + jax.random.uniform(kg, (2 * C,), jnp.float32)          # positive
        b = jax.random.uniform(kb, (2 * C,), jnp.float32,
                               -1.0 / fan_in ** 0.5, 1.0 / fan_in ** 0.5)
        norm = jnp.sqrt(jnp.sum(v * v, axis=(1, 2, 3), keepdims=True))
        w_eff = v * (g[:, None, None, None] / norm)                      # (2C, C, W, 1)
        params.append((w_eff, b))
    return params


def prepare_stacked_cnn_params(params, *, width, matmul_dtype=jnp.float32):
    """One-time layout prep (weight-norm already resolved in `params`).

    (2C, C, width, 1) -> (width, C, 2C) -> (width*C, 2C), stacked over layers.
    Done once at parameter-prep time, NOT on the per-forward path.
    """
    C = params[0][0].shape[1]
    w_list, b_list = [], []
    for (w_eff, b) in params:
        w_full = jnp.transpose(w_eff[..., 0], (2, 1, 0))       # (width, C, 2C)
        w_list.append(w_full.reshape(width * C, 2 * C))        # im2col layout
        b_list.append(b[None, :])                               # (1, 2C)
    w_stacked = jnp.stack(w_list).astype(matmul_dtype)          # (L, width*C, 2C)
    b_stacked = jnp.stack(b_list).astype(jnp.float32)           # (L, 1, 2C)
    return w_stacked, b_stacked


def stacked_cnn_forward_pallas(x_nchw, w_stacked, b_stacked, *, width=3,
                               batch_block=None, matmul_dtype=jnp.float32):
    """x_nchw: (B, C, T, 1) as in PyTorch.  Returns (B, C, T, 1)."""
    x = jnp.transpose(x_nchw[..., 0], (0, 2, 1))                # (B, T, C)
    y = stacked_cnn_pallas(x, w_stacked, b_stacked, width=width,
                           batch_block=batch_block, matmul_dtype=matmul_dtype)
    return jnp.transpose(y, (0, 2, 1))[..., None]               # (B, C, T, 1)


def stacked_cnn_forward_ref(x_nchw, params, *, width=3):
    """Pure-JAX reference using lax.conv, mirroring the PyTorch forward."""
    pad = width // 2
    C = x_nchw.shape[1]
    x = x_nchw
    for (w_eff, b) in params:
        conv = jax.lax.conv_general_dilated(
            x, w_eff, window_strides=(1, 1),
            padding=((pad, pad), (0, 0)),
            dimension_numbers=("NCHW", "OIHW", "NCHW"))
        conv = conv + b[None, :, None, None]
        out, gate = conv[:, :C], conv[:, C:]
        x = (x + out * jax.nn.sigmoid(gate)) * SCALE_WEIGHT
    return x


if __name__ == "__main__":
    # Small shapes consistent with the module: batch=2, hidden=32, seq=16.
    B, C, T = 2, 32, 16
    NUM_LAYERS, WIDTH, DROPOUT = 2, 3, 0.2

    key = jax.random.PRNGKey(0)
    kx, kp = jax.random.split(key)
    x = jax.random.normal(kx, (B, C, T, 1), jnp.float32)        # NCHW like PyTorch

    params = init_stacked_cnn_params(kp, NUM_LAYERS, C, width=WIDTH, dropout=DROPOUT)
    # Hoisted one-time weight-norm/layout prep (not on the forward path).
    w_stacked, b_stacked = prepare_stacked_cnn_params(params, width=WIDTH)

    y_ref = jax.block_until_ready(stacked_cnn_forward_ref(x, params, width=WIDTH))

    # Path 1: auto batch_block (one row per grid step here; "parallel" batch axis).
    fwd = jax.jit(functools.partial(stacked_cnn_forward_pallas, width=WIDTH))
    y = jax.block_until_ready(fwd(x, w_stacked, b_stacked))
    assert y.shape == x.shape
    assert jnp.allclose(y, y_ref, atol=1e-5, rtol=1e-5), "mismatch (per-batch grid)"

    # Path 2: whole batch fused into one grid step / one matmul per layer.
    fwd_fused = jax.jit(functools.partial(stacked_cnn_forward_pallas, width=WIDTH,
                                          batch_block=B))
    y2 = jax.block_until_ready(fwd_fused(x, w_stacked, b_stacked))
    assert jnp.allclose(y2, y_ref, atol=1e-5, rtol=1e-5), "mismatch (batch-fused)"

    print("KERNEL_OK")
</pallas_src>

<mosaic_0001>
module attributes {stable_mosaic.version = 11 : i64} {
  func.func @_stacked_gated_conv_kernel(%arg0: i32, %arg1: memref<1x16x32xf32, #tpu.memory_space<vmem>>, %arg2: memref<2x96x64xf32, #tpu.memory_space<vmem>>, %arg3: memref<2x1x64xf32, #tpu.memory_space<vmem>>, %arg4: memref<1x16x32xf32, #tpu.memory_space<vmem>>, %arg5: memref<18x32xf32, #tpu.memory_space<vmem>>) attributes {dimension_semantics = [#tpu.dimension_semantics<parallel>], iteration_bounds = array<i64: 2>, scalar_prefetch = 0 : i64, scratch_operands = 1 : i64, tpu.core_type = #tpu.core_type<tc>, window_params = [{transform_indices = @transform_0, window_bounds = array<i64: 1, 16, 32>}, {pipeline_mode = #tpu.pipeline_mode<synchronous>, transform_indices = @transform_1, window_bounds = array<i64: 2, 96, 64>}, {pipeline_mode = #tpu.pipeline_mode<synchronous>, transform_indices = @transform_2, window_bounds = array<i64: 2, 1, 64>}, {transform_indices = @transform_3, window_bounds = array<i64: 1, 16, 32>}]} {
    %cst = arith.constant 0.000000e+00 : f32
    %0 = vector.broadcast %cst : f32 to vector<1x32xf32>
    %c0 = arith.constant 0 : index
    %c0_0 = arith.constant 0 : index
    %1 = vector.load %arg5[%c0, %c0_0] : memref<18x32xf32, #tpu.memory_space<vmem>>, vector<1x32xf32>
    tpu.vector_store %arg5[%c0, %c0_0], %0 {strides = array<i32>} : memref<18x32xf32, #tpu.memory_space<vmem>>, vector<1x32xf32>,
    %cst_1 = arith.constant 0.000000e+00 : f32
    %2 = vector.broadcast %cst_1 : f32 to vector<1x32xf32>
    %c17 = arith.constant 17 : index
    %c0_2 = arith.constant 0 : index
    %3 = vector.load %arg5[%c17, %c0_2] : memref<18x32xf32, #tpu.memory_space<vmem>>, vector<1x32xf32>
    tpu.vector_store %arg5[%c17, %c0_2], %2 {strides = array<i32>} : memref<18x32xf32, #tpu.memory_space<vmem>>, vector<1x32xf32>,
    %c0_3 = arith.constant 0 : index
    %c0_4 = arith.constant 0 : index
    %c0_5 = arith.constant 0 : index
    %4 = vector.load %arg1[%c0_3, %c0_4, %c0_5] : memref<1x16x32xf32, #tpu.memory_space<vmem>>, vector<1x16x32xf32>
    %5 = vector.shape_cast %4 : vector<1x16x32xf32> to vector<16x32xf32>
    %c1 = arith.constant 1 : index
    %c0_6 = arith.constant 0 : index
    %6 = vector.load %arg5[%c1, %c0_6] : memref<18x32xf32, #tpu.memory_space<vmem>>, vector<16x32xf32>
    tpu.vector_store %arg5[%c1, %c0_6], %5 {strides = array<i32>} : memref<18x32xf32, #tpu.memory_space<vmem>>, vector<16x32xf32>,
    %c0_7 = arith.constant 0 : index
    %c0_8 = arith.constant 0 : index
    %7 = vector.load %arg5[%c0_7, %c0_8] : memref<18x32xf32, #tpu.memory_space<vmem>>, vector<16x32xf32>
    %c1_9 = arith.constant 1 : index
    %c0_10 = arith.constant 0 : index
    %8 = vector.load %arg5[%c1_9, %c0_10] : memref<18x32xf32, #tpu.memory_space<vmem>>, vector<16x32xf32>
    %c2 = arith.constant 2 : index
    %c0_11 = arith.constant 0 : index
    %9 = vector.load %arg5[%c2, %c0_11] : memref<18x32xf32, #tpu.memory_space<vmem>>, vector<16x32xf32>
    %10 = tpu.concatenate %7, %8, %9 in 1 : vector<16x32xf32>, vector<16x32xf32>, vector<16x32xf32> -> vector<16x96xf32>
    %c0_12 = arith.constant 0 : index
    %c0_13 = arith.constant 0 : index
    %c0_14 = arith.constant 0 : index
    %11 = vector.load %arg2[%c0_12, %c0_13, %c0_14] : memref<2x96x64xf32, #tpu.memory_space<vmem>>, vector<1x96x64xf32>
    %12 = vector.shape_cast %11 : vector<1x96x64xf32> to vector<96x64xf32>
    %cst_15 = arith.constant dense<0.000000e+00> : vector<16x64xf32>
    %13 = tpu.matmul %10, %12, %cst_15 {dimension_numbers = #tpu.dot_dimension_numbers<[1], [0], [0], [1], [0, 0, 1, 1], [], []>} : vector<16x96xf32>, vector<96x64xf32>, vector<16x64xf32> -> vector<16x64xf32>
    %c0_16 = arith.constant 0 : index
    %c0_17 = arith.constant 0 : index
    %c0_18 = arith.constant 0 : index
    %14 = vector.load %arg3[%c0_16, %c0_17, %c0_18] : memref<2x1x64xf32, #tpu.memory_space<vmem>>, vector<1x1x64xf32>
    %15 = vector.shape_cast %14 : vector<1x1x64xf32> to vector<1x64xf32>
    %16 = vector.broadcast %15 : vector<1x64xf32> to vector<16x64xf32>
    %17 = arith.addf %13, %16 : vector<16x64xf32>
    %18 = vector.extract_strided_slice %17 {offsets = [0, 0], sizes = [16, 32], strides = [1, 1]} : vector<16x64xf32> to vector<16x32xf32>
    %19 = vector.extract_strided_slice %17 {offsets = [0, 32], sizes = [16, 32], strides = [1, 1]} : vector<16x64xf32> to vector<16x32xf32>
    %20 = arith.negf %19 : vector<16x32xf32>
    %21 = math.exp %20 : vector<16x32xf32>
    %cst_19 = arith.constant 1.000000e+00 : f32
    %22 = vector.broadcast %cst_19 : f32 to vector<16x32xf32>
    %23 = arith.addf %22, %21 : vector<16x32xf32>
    %24 = arith.divf %22, %23 : vector<16x32xf32>
    %25 = arith.mulf %18, %24 : vector<16x32xf32>
    %26 = arith.addf %8, %25 : vector<16x32xf32>
    %cst_20 = arith.constant 0.707106769 : f32
    %27 = vector.broadcast %cst_20 : f32 to vector<16x32xf32>
    %28 = arith.mulf %26, %27 : vector<16x32xf32>
    %c1_21 = arith.constant 1 : index
    %c0_22 = arith.constant 0 : index
    %29 = vector.load %arg5[%c1_21, %c0_22] : memref<18x32xf32, #tpu.memory_space<vmem>>, vector<16x32xf32>
    tpu.vector_store %arg5[%c1_21, %c0_22], %28 {strides = array<i32>} : memref<18x32xf32, #tpu.memory_space<vmem>>, vector<16x32xf32>,
    %c0_23 = arith.constant 0 : index
    %c0_24 = arith.constant 0 : index
    %30 = vector.load %arg5[%c0_23, %c0_24] : memref<18x32xf32, #tpu.memory_space<vmem>>, vector<16x32xf32>
    %c1_25 = arith.constant 1 : index
    %c0_26 = arith.constant 0 : index
    %31 = vector.load %arg5[%c1_25, %c0_26] : memref<18x32xf32, #tpu.memory_space<vmem>>, vector<16x32xf32>
    %c2_27 = arith.constant 2 : index
    %c0_28 = arith.constant 0 : index
    %32 = vector.load %arg5[%c2_27, %c0_28] : memref<18x32xf32, #tpu.memory_space<vmem>>, vector<16x32xf32>
    %33 = tpu.concatenate %30, %31, %32 in 1 : vector<16x32xf32>, vector<16x32xf32>, vector<16x32xf32> -> vector<16x96xf32>
    %c1_29 = arith.constant 1 : index
    %c0_30 = arith.constant 0 : index
    %c0_31 = arith.constant 0 : index
    %34 = vector.load %arg2[%c1_29, %c0_30, %c0_31] : memref<2x96x64xf32, #tpu.memory_space<vmem>>, vector<1x96x64xf32>
    %35 = vector.shape_cast %34 : vector<1x96x64xf32> to vector<96x64xf32>
    %cst_32 = arith.constant dense<0.000000e+00> : vector<16x64xf32>
    %36 = tpu.matmul %33, %35, %cst_32 {dimension_numbers = #tpu.dot_dimension_numbers<[1], [0], [0], [1], [0, 0, 1, 1], [], []>} : vector<16x96xf32>, vector<96x64xf32>, vector<16x64xf32> -> vector<16x64xf32>
    %c1_33 = arith.constant 1 : index
    %c0_34 = arith.constant 0 : index
    %c0_35 = arith.constant 0 : index
    %37 = vector.load %arg3[%c1_33, %c0_34, %c0_35] : memref<2x1x64xf32, #tpu.memory_space<vmem>>, vector<1x1x64xf32>
    %38 = vector.shape_cast %37 : vector<1x1x64xf32> to vector<1x64xf32>
    %39 = vector.broadcast %38 : vector<1x64xf32> to vector<16x64xf32>
    %40 = arith.addf %36, %39 : vector<16x64xf32>
    %41 = vector.extract_strided_slice %40 {offsets = [0, 0], sizes = [16, 32], strides = [1, 1]} : vector<16x64xf32> to vector<16x32xf32>
    %42 = vector.extract_strided_slice %40 {offsets = [0, 32], sizes = [16, 32], strides = [1, 1]} : vector<16x64xf32> to vector<16x32xf32>
    %43 = arith.negf %42 : vector<16x32xf32>
    %44 = math.exp %43 : vector<16x32xf32>
    %cst_36 = arith.constant 1.000000e+00 : f32
    %45 = vector.broadcast %cst_36 : f32 to vector<16x32xf32>
    %46 = arith.addf %45, %44 : vector<16x32xf32>
    %47 = arith.divf %45, %46 : vector<16x32xf32>
    %48 = arith.mulf %41, %47 : vector<16x32xf32>
    %49 = arith.addf %31, %48 : vector<16x32xf32>
    %cst_37 = arith.constant 0.707106769 : f32
    %50 = vector.broadcast %cst_37 : f32 to vector<16x32xf32>
    %51 = arith.mulf %49, %50 : vector<16x32xf32>
    %c0_38 = arith.constant 0 : index
    %c0_39 = arith.constant 0 : index
    %c0_40 = arith.constant 0 : index
    %52 = vector.load %arg4[%c0_38, %c0_39, %c0_40] : memref<1x16x32xf32, #tpu.memory_space<vmem>>, vector<1x16x32xf32>
    %53 = vector.shape_cast %52 : vector<1x16x32xf32> to vector<16x32xf32>
    %54 = vector.shape_cast %51 : vector<16x32xf32> to vector<1x16x32xf32>
    tpu.vector_store %arg4[%c0_38, %c0_39, %c0_40], %54 {strides = array<i32>} : memref<1x16x32xf32, #tpu.memory_space<vmem>>, vector<1x16x32xf32>,
    return
  }
  func.func @transform_0(%arg0: i32) -> (i32, i32, i32) {
    %c0_i32 = arith.constant 0 : i32
    %c0_i32_0 = arith.constant 0 : i32
    %c0_i32_1 = arith.constant 0 : i32
    return %arg0, %c0_i32, %c0_i32_0 : i32, i32, i32
  }
  func.func @transform_1(%arg0: i32) -> (i32, i32, i32) {
    %c0_i32 = arith.constant 0 : i32
    %c0_i32_0 = arith.constant 0 : i32
    %c0_i32_1 = arith.constant 0 : i32
    %c0_i32_2 = arith.constant 0 : i32
    return %c0_i32, %c0_i32_0, %c0_i32_1 : i32, i32, i32
  }
  func.func @transform_2(%arg0: i32) -> (i32, i32, i32) {
    %c0_i32 = arith.constant 0 : i32
    %c0_i32_0 = arith.constant 0 : i32
    %c0_i32_1 = arith.constant 0 : i32
    %c0_i32_2 = arith.constant 0 : i32
    return %c0_i32, %c0_i32_0, %c0_i32_1 : i32, i32, i32
  }
  func.func @transform_3(%arg0: i32) -> (i32, i32, i32) {
    %c0_i32 = arith.constant 0 : i32
    %c0_i32_0 = arith.constant 0 : i32
    %c0_i32_1 = arith.constant 0 : i32
    return %arg0, %c0_i32, %c0_i32_0 : i32, i32, i32
  }
}

</mosaic_0001>

<llo_original>
// kernel: stacked_cnn_forward_pallas.1
$region0: #{stacked_cnn_forward_pallas.1}
  #allocation0 [shape = 'u32[]', space=smem, size = 0x4, offset = 0x4, fixed_abs, tag = 'smem constant byte address 0x4 - core index']
  #allocation1 [shape = 'u32[144,128]{1,0:T(1,128)}', space=vmem, size = 0x12000, scoped, tag = 'internal scratch']
  #allocation2 [shape = 'f32[18,32]{1,0:T(8,128)}', space=vmem, size = 0x3000, scoped, tag = 'scratch operand']
  %s0 = inlined_call_operand.vmem [shape: f32[2,16,32], index: 0, kind: input, shape index: {}]
  %s1 = inlined_call_operand.vmem [shape: f32[2,96,64], index: 1, kind: input, shape index: {}]
  %s2 = inlined_call_operand.vmem [shape: f32[2,1,64], index: 2, kind: input, shape index: {}]
  %s3 = inlined_call_operand.hbm [shape: f32[2,16,32], index: 3, kind: output, shape index: {}]
  %s4 = sld [smem:[#allocation0]]
  $region45: #{stacked_cnn_forward_pallas.1} parent=0
    _
  %s6 = ssub.s32 1, %s4
  %s7 = scalar_select 0, %s6, %s4
  $region1: #{stacked_cnn_forward_pallas.1} parent=0
    #allocation3 [shape = 'u8[16384]{0}', space=vmem, size = 0x4000, scoped, tag = 'output window, operand 0']
    #allocation4 [shape = 's32[2]{0}', space=sflag, size = 0x8, scoped, tag = 'scoped memory for stacked_cnn_forward_pallas.1']
    %8 = vsyncpa [#allocation4], 0
    %s9 = scalar_lea.sflag [#allocation4], 1
    %10 = vsyncpa %s9, 0
    loop: start=0, step=1, limit=4
    $region2: #{stacked_cnn_forward_pallas.1} parent=1 // loop_pre_header
      _
    $region3: #{stacked_cnn_forward_pallas.1} parent=1 // loop_header
      %s12 = sphi 0, %s16
      %p13 = scmp.ge.s32.totalorder %s12, 4
      %s22 = sphi 0, %s24
      %s25 = sphi 0, %s22
      %s26 = sphi 0, %s25
      %s42 = sphi 0, %s26
      %s46 = sphi 0, %s46
      %s48 = sphi 0, %s46
      %s49 = sphi 0, %s48
      %s63 = sphi 0, %s49
      %s67 = sphi 0, %s67
      %s69 = sphi 0, %s67
      %s70 = sphi 0, %s69
      %s84 = sphi 0, %s70
      %s90 = sphi 0, %s92
      %s93 = sphi 0, %s90
      %s94 = sphi 0, %s93
      %s110 = sphi 0, %s94
    $region4: #{stacked_cnn_forward_pallas.1} parent=1 // loop_header_branch
      %15 = sbr.rel (%p13) target = $region8
    $region5: #{stacked_cnn_forward_pallas.1} parent=1 // loop_body
      %s17 = ssub.s32 %s12, 1
      %s18 = ssub.s32 %s12, 2
      %s19 = sadd.s32 %s12, 1
      %s20 = ssub.s32 %s12, %s19
      %p21 = scmp.eq.s32.totalorder %s20, 0
      %s23 = sadd.s32 %s22, 1
      %s24 = scalar_select %p21, %s22, %s23
      %p27 = pneg %p21
      %p28 = scmp.eq.s32.totalorder %s12, 1
      %p29 = por %p27, %p28
      %p30 = scmp.ne.s32.totalorder %s22, %s25
      %p31 = scmp.eq.s32.totalorder %s12, 0
      %p32 = por %p30, %p31
      %p33 = scmp.ne.s32.totalorder %s22, %s25
      %p34 = scmp.eq.s32.totalorder %s17, 1
      %p35 = por %p33, %p34
      %p36 = scmp.ne.s32.totalorder %s25, %s26
      %p37 = scmp.eq.s32.totalorder %s17, 0
      %p38 = por %p36, %p37
      %p39 = scmp.ne.s32.totalorder %s25, %s26
      %p40 = scmp.eq.s32.totalorder %s18, 1
      %p41 = por %p39, %p40
      %p43 = scmp.ne.s32.totalorder %s26, %s42
      %p44 = scmp.eq.s32.totalorder %s18, 0
      %p45 = por %p43, %p44
      %s47 = sadd.s32 %s46, 1
      %p50 = scmp.eq.s32.totalorder %s12, 1
      %p51 = scmp.ne.s32.totalorder %s46, %s48
      %p52 = scmp.eq.s32.totalorder %s12, 0
      %p53 = por %p51, %p52
      %p54 = scmp.ne.s32.totalorder %s46, %s48
      %p55 = scmp.eq.s32.totalorder %s17, 1
      %p56 = por %p54, %p55
      %p57 = scmp.ne.s32.totalorder %s48, %s49
      %p58 = scmp.eq.s32.totalorder %s17, 0
      %p59 = por %p57, %p58
      %p60 = scmp.ne.s32.totalorder %s48, %s49
      %p61 = scmp.eq.s32.totalorder %s18, 1
      %p62 = por %p60, %p61
      %p64 = scmp.ne.s32.totalorder %s49, %s63
      %p65 = scmp.eq.s32.totalorder %s18, 0
      %p66 = por %p64, %p65
      %s68 = sadd.s32 %s67, 1
      %p71 = scmp.eq.s32.totalorder %s12, 1
      %p72 = scmp.ne.s32.totalorder %s67, %s69
      %p73 = scmp.eq.s32.totalorder %s12, 0
      %p74 = por %p72, %p73
      %p75 = scmp.ne.s32.totalorder %s67, %s69
      %p76 = scmp.eq.s32.totalorder %s17, 1
      %p77 = por %p75, %p76
      %p78 = scmp.ne.s32.totalorder %s69, %s70
      %p79 = scmp.eq.s32.totalorder %s17, 0
      %p80 = por %p78, %p79
      %p81 = scmp.ne.s32.totalorder %s69, %s70
      %p82 = scmp.eq.s32.totalorder %s18, 1
      %p83 = por %p81, %p82
      %p85 = scmp.ne.s32.totalorder %s70, %s84
      %p86 = scmp.eq.s32.totalorder %s18, 0
      %p87 = por %p85, %p86
      %s88 = ssub.s32 %s12, %s19
      %p89 = scmp.eq.s32.totalorder %s88, 0
      %s91 = sadd.s32 %s90, 1
      %s92 = scalar_select %p89, %s90, %s91
      %p95 = pneg %p89
      %p96 = scmp.eq.s32.totalorder %s12, 1
      %p97 = por %p95, %p96
      %p98 = scmp.ne.s32.totalorder %s90, %s93
      %p99 = scmp.eq.s32.totalorder %s12, 0
      %p100 = por %p98, %p99
      %p101 = scmp.ne.s32.totalorder %s90, %s93
      %p102 = scmp.eq.s32.totalorder %s17, 1
      %p103 = por %p101, %p102
      %p104 = scmp.ne.s32.totalorder %s93, %s94
      %p105 = scmp.eq.s32.totalorder %s17, 0
      %p106 = por %p104, %p105
      %p107 = scmp.ne.s32.totalorder %s93, %s94
      %p108 = scmp.eq.s32.totalorder %s18, 1
      %p109 = por %p107, %p108
      %p111 = scmp.ne.s32.totalorder %s94, %s110
      %p112 = scmp.eq.s32.totalorder %s18, 0
      %p113 = por %p111, %p112
      %p114 = scmp.le.s32.totalorder 1, %s12
      %p115 = scmp.lt.s32.totalorder %s12, 3
      %p116 = pnand %p114, %p115
      %p117 = pneg %p116
      // Predicated region
      $region9: #{stacked_cnn_forward_pallas.1} parent=5 // pred_check
        _
      $region10: #{stacked_cnn_forward_pallas.1} parent=5 // pred_check_branch
        %119 = sbr.rel (%p116) target = $region12
      $region11: #{stacked_cnn_forward_pallas.1} parent=5 // pred_region
        %s120 = ssub.s32 %s12, 1
        // Predicated region
        $region13: #{stacked_cnn_forward_pallas.1} parent=11 // pred_check
          %p121 = pneg %p59
        $region14: #{stacked_cnn_forward_pallas.1} parent=11 // pred_check_branch
          %123 = sbr.rel (%p121) target = $region16
        $region15: #{stacked_cnn_forward_pallas.1} parent=11 // pred_region
          _
        $region16: #{stacked_cnn_forward_pallas.1} parent=11 // pred_fallthru
          _
        // Predicated region
        $region17: #{stacked_cnn_forward_pallas.1} parent=11 // pred_check
          %p124 = pneg %p80
        $region18: #{stacked_cnn_forward_pallas.1} parent=11 // pred_check_branch
          %126 = sbr.rel (%p124) target = $region20
        $region19: #{stacked_cnn_forward_pallas.1} parent=11 // pred_region
          _
        $region20: #{stacked_cnn_forward_pallas.1} parent=11 // pred_fallthru
          _
      $region12: #{stacked_cnn_forward_pallas.1} parent=5 // pred_fallthru
        _
      %p127 = scmp.lt.s32.totalorder %s12, 2
      // Predicated region
      $region21: #{stacked_cnn_forward_pallas.1} parent=5 // pred_check
        %p128 = pneg %p127
      $region22: #{stacked_cnn_forward_pallas.1} parent=5 // pred_check_branch
        %130 = sbr.rel (%p128) target = $region24
      $region23: #{stacked_cnn_forward_pallas.1} parent=5 // pred_region
        // Predicated region
        $region25: #{stacked_cnn_forward_pallas.1} parent=23 // pred_check
          %p131 = pneg %p32
        $region26: #{stacked_cnn_forward_pallas.1} parent=23 // pred_check_branch
          %133 = sbr.rel (%p131) target = $region28
        $region27: #{stacked_cnn_forward_pallas.1} parent=23 // pred_region
          %p134 = scmp.lt.s32.totalorder %s12, 1
          %s135 = scalar_select %p134, %s12, 1
          %s136 = smul.addr %s135, 2
          %s137 = smul.addr %s136, 8
          %s138 = scalar_lea.vmem %s0, %s137
        $region28: #{stacked_cnn_forward_pallas.1} parent=23 // pred_fallthru
          _
      $region24: #{stacked_cnn_forward_pallas.1} parent=5 // pred_fallthru
        _
      %p139 = scmp.le.s32.totalorder 1, %s12
      %p140 = scmp.lt.s32.totalorder %s12, 3
      %p141 = pnand %p139, %p140
      %p142 = pneg %p141
      // Predicated region
      $region29: #{stacked_cnn_forward_pallas.1} parent=5 // pred_check
        _
      $region30: #{stacked_cnn_forward_pallas.1} parent=5 // pred_check_branch
        %144 = sbr.rel (%p141) target = $region32
      $region31: #{stacked_cnn_forward_pallas.1} parent=5 // pred_region
        %s145 = ssub.s32 %s12, 1
        %p146 = scmp.lt.s32.totalorder %s17, 1
        %s147 = scalar_select %p146, %s17, 1
        %s148 = smul.addr %s147, 2
        %s149 = smul.addr %s148, 8
        %s150 = scalar_lea.vmem %s0, %s149
        %p151 = pneg %p38
        %p152 = pneg %p35
        %p153 = pneg %p59
        %p154 = pneg %p56
        %p155 = pneg %p80
        %p156 = pneg %p77
        %p157 = pneg %p106
        %p158 = pneg %p103
        %s159 = sand.u32 %s93, 1
        %s160 = scalar_lea.sflag [#allocation4], %s159
        %s161 = sand.u32 %s93, 1
        %s162 = smul.addr %s161, 16
        %s163 = scalar_lea.vmem [#allocation3], %s162
        %p164 = scmp.lt.s32.totalorder %s17, 1
        %s165 = scalar_select %p164, %s17, 1
        %s166 = smul.addr %s165, 2
        %s167 = smul.addr %s166, 8
        %s168 = scalar_lea.vmem %s0, %s167
        %vm169 = vcmask 253952
        %170 = vst.msk [vmem:[#allocation2] sm:$0x1] %vm169, 0.0
        %171 = vst.msk [vmem:[#allocation2 + $0x11] sm:$0x1] %vm169, 0.0
        %v172 = vld [vmem:[%s168] sm:$0xff]
        %v173 = vld [vmem:[%s168 + $0x8] sm:$0xff]
        %vm174 = vcmask 261120
        %175 = vst.msk [vmem:[#allocation2 + $0x1] sm:$0xff] %vm174, %v172
        %176 = vst.msk [vmem:[#allocation2 + $0x9] sm:$0xff] %vm174, %v173
        %v177 = vld [vmem:[#allocation2] sm:$0xff]
        %v178 = vld [vmem:[#allocation2 + $0x8] sm:$0xff]
        %v179 = vld [vmem:[#allocation2 + $0x1] sm:$0xff]
        %v180 = vld [vmem:[#allocation2 + $0x9] sm:$0xff]
        %v181 = vld [vmem:[#allocation2 + $0x2] sm:$0xff]
        %v182 = vld [vmem:[#allocation2 + $0xa] sm:$0xff]
        %185 = vrot.lane.b32.xlu0 %v179, 32
        %v186 = vpop.permute.xlu0 %185
        %187 = vrot.lane.b32.xlu0 %v180, 32
        %v188 = vpop.permute.xlu0 %187
        %193 = vrot.lane.b32.xlu0 %v181, 64
        %v194 = vpop.permute.xlu0 %193
        %195 = vrot.lane.b32.xlu0 %v182, 64
        %v196 = vpop.permute.xlu0 %195
        %v199 = vsel %vm174, %v177, %v186
        %v200 = vsel %vm174, %v178, %v188
        %vm201 = vcmask 523264
        %v202 = vsel %vm201, %v199, %v194
        %v203 = vsel %vm201, %v200, %v196
        %v204 = vld [vmem:[%s1] sm:$0xff]
        %v205 = vld [vmem:[%s1 + $0x8] sm:$0xff]
        %v206 = vld [vmem:[%s1 + $0x10] sm:$0xff]
        %v207 = vld [vmem:[%s1 + $0x18] sm:$0xff]
        %v208 = vld [vmem:[%s1 + $0x20] sm:$0xff]
        %v209 = vld [vmem:[%s1 + $0x28] sm:$0xff]
        %v210 = vld [vmem:[%s1 + $0x30] sm:$0xff]
        %v211 = vld [vmem:[%s1 + $0x38] sm:$0xff]
        %v212 = vld [vmem:[%s1 + $0x40] sm:$0xff]
        %v213 = vld [vmem:[%s1 + $0x48] sm:$0xff]
        %v214 = vld [vmem:[%s1 + $0x50] sm:$0xff]
        %v215 = vld [vmem:[%s1 + $0x58] sm:$0xff]
        %v216 = vld [vmem:[%s2] sm:$0x1]
        %v218 = vlaneseq
        %v219 = vshrl.u32 %v218, 7
        %v220 = vsub.s32 0, %v219
        %v221 = vrot.slane %v216, %v220
        %vm223 = vcmask 785408
        %v225 = vsel %vm223, %v202, 0
        %v228 = vsel %vm223, %v203, 0
        %230 = vmatprep.subr.mxu0 0.0
        %231 = vmatpush1.msra.mxu0 %v204
        %232 = vmatprep.subr.mxu0 0.0
        %233 = vmatpush1.msra.mxu0 %v205
        %234 = vmatprep.subr.mxu0 0.0
        %235 = vmatpush1.msra.mxu0 %v206
        %236 = vmatprep.subr.mxu0 0.0
        %237 = vmatpush1.msra.mxu0 %v207
        %238 = vmatprep.subr.mxu0 0.0
        %239 = vmatpush1.msra.mxu0 %v208
        %240 = vmatprep.subr.mxu0 0.0
        %241 = vmatpush1.msra.mxu0 %v209
        %242 = vmatprep.subr.mxu0 0.0
        %243 = vmatpush1.msra.mxu0 %v210
        %244 = vmatprep.subr.mxu0 0.0
        %245 = vmatpush1.msra.mxu0 %v211
        %246 = vmatprep.subr.mxu0 0.0
        %247 = vmatpush1.msra.mxu0 %v212
        %248 = vmatprep.subr.mxu0 0.0
        %249 = vmatpush1.msra.mxu0 %v213
        %250 = vmatprep.subr.mxu0 0.0
        %251 = vmatpush1.msra.mxu0 %v214
        %252 = vmatprep.subr.mxu0 0.0
        %253 = vmatpush1.msra.mxu0 %v215
        %254 = vmatprep.subr.mxu0 0.0
        %255 = vmatpush1.msra.mxu0 0.0
        %256 = vmatprep.subr.mxu0 0.0
        %257 = vmatpush1.msra.mxu0 0.0
        %258 = vmatprep.subr.mxu0 0.0
        %259 = vmatpush1.msra.mxu0 0.0
        %260 = vmatprep.subr.mxu0 0.0
        %261 = vmatpush1.msra.mxu0 0.0
        %262 = vmatprep.subr.mxu0 0.0
        %263 = vmatpush1.msra.mxu0 0.0
        %264 = vmatprep.subr.mxu0 0.0
        %265 = vmatpush1.msra.mxu0 0.0
        %266 = vmatprep.subr.mxu0 0.0
        %267 = vmatpush1.msra.mxu0 0.0
        %268 = vmatprep.subr.mxu0 0.0
        %269 = vmatpush1.msra.mxu0 0.0
        %270 = vmatprep.subr.mxu0 0.0
        %271 = vmatpush1.msra.mxu0 0.0
        %272 = vmatprep.subr.mxu0 0.0
        %273 = vmatpush1.msra.mxu0 0.0
        %274 = vmatprep.subr.mxu0 0.0
        %275 = vmatpush1.msra.mxu0 0.0
        %276 = vmatprep.subr.mxu0 0.0
        %277 = vmatpush1.msra.mxu0 0.0
        %278 = vmatprep.subr.mxu0 0.0
        %279 = vmatpush1.msra.mxu0 0.0
        %280 = vmatprep.subr.mxu0 0.0
        %281 = vmatpush1.msra.mxu0 0.0
        %282 = vmatprep.subr.mxu0 0.0
        %283 = vmatpush1.msra.mxu0 0.0
        %284 = vmatprep.subr.mxu0 0.0
        %285 = vmatpush1.msra.mxu0 0.0
        %286 = vmatprep.subr.mxu0 0.0
        %287 = vmatpush1.msra.mxu0 0.0
        %288 = vmatprep.subr.mxu0 0.0
        %289 = vmatpush1.msra.mxu0 0.0
        %290 = vmatprep.subr.mxu0 0.0
        %291 = vmatpush1.msra.mxu0 0.0
        %292 = vmatprep.subr.mxu0 0.0
        %293 = vmatpush1.msra.mxu0 0.0
        %294 = vmatprep.mubr.f32.mxu0 0.0
        %295 = vmatmul.mubr.f32.gmra.mrb[0].mxu0 %v225
        %v296 = vpop.f32.mrb[0].mxu0
        %v297 = vadd.f32 %v221, %v296
        %v298 = vpop.f32.mrb[0].mxu0
        %299 = vmatprep.mubr.f32.mxu0 0.0
        %300 = vmatmul.mubr.f32.gmra.mrb[0].mxu0 %v228
        %v301 = vpop.f32.mrb[0].mxu0
        %v302 = vadd.f32 %v221, %v301
        %v303 = vpop.f32.mrb[0].mxu0
        %304 = vdwg.mxu0
        %v305 = vxor.u32 %v297, 2147483648
        %v306 = vxor.u32 %v302, 2147483648
        %v307 = vmul.f32 %v305, 1.442695
        %v308 = vpow.pop %v307
        %v309 = vmul.f32 %v306, 1.442695
        %v310 = vpow.pop %v309
        %v311 = vadd.f32 %v308, 1.0
        %v312 = vadd.f32 %v310, 1.0
        %v313 = vrcp.pop %v311
        %v314 = vmul.f32 1.0, %v313
        %v315 = vrcp.pop %v312
        %v316 = vmul.f32 1.0, %v315
        %319 = vrot.lane.b32.xlu0 %v314, 96
        %v320 = vpop.permute.xlu0 %319
        %321 = vrot.lane.b32.xlu0 %v316, 96
        %v322 = vpop.permute.xlu0 %321
        %v325 = vmul.f32 %v297, %v320
        %v326 = vmul.f32 %v302, %v322
        %v327 = vadd.f32 %v179, %v325
        %v328 = vadd.f32 %v180, %v326
        %v329 = vmul.f32 %v327, 0.70710677
        %v330 = vmul.f32 %v328, 0.70710677
        %331 = vst.msk [vmem:[#allocation2 + $0x1] sm:$0xff] %vm174, %v329
        %332 = vst.msk [vmem:[#allocation2 + $0x9] sm:$0xff] %vm174, %v330
        %v333 = vld [vmem:[#allocation2] sm:$0xff]
        %v334 = vld [vmem:[#allocation2 + $0x8] sm:$0xff]
        %v335 = vld [vmem:[#allocation2 + $0x1] sm:$0xff]
        %v336 = vld [vmem:[#allocation2 + $0x9] sm:$0xff]
        %v337 = vld [vmem:[#allocation2 + $0x2] sm:$0xff]
        %v338 = vld [vmem:[#allocation2 + $0xa] sm:$0xff]
        %341 = vrot.lane.b32.xlu0 %v335, 32
        %v342 = vpop.permute.xlu0 %341
        %343 = vrot.lane.b32.xlu0 %v336, 32
        %v344 = vpop.permute.xlu0 %343
        %349 = vrot.lane.b32.xlu0 %v337, 64
        %v350 = vpop.permute.xlu0 %349
        %351 = vrot.lane.b32.xlu0 %v338, 64
        %v352 = vpop.permute.xlu0 %351
        %v355 = vsel %vm174, %v333, %v342
        %v356 = vsel %vm174, %v334, %v344
        %v357 = vsel %vm201, %v355, %v350
        %v358 = vsel %vm201, %v356, %v352
        %s359 = scalar_lea.vmem %s1, 96
        %v360 = vld [vmem:[%s359] sm:$0xff]
        %v361 = vld [vmem:[%s359 + $0x8] sm:$0xff]
        %v362 = vld [vmem:[%s359 + $0x10] sm:$0xff]
        %v363 = vld [vmem:[%s359 + $0x18] sm:$0xff]
        %v364 = vld [vmem:[%s359 + $0x20] sm:$0xff]
        %v365 = vld [vmem:[%s359 + $0x28] sm:$0xff]
        %v366 = vld [vmem:[%s359 + $0x30] sm:$0xff]
        %v367 = vld [vmem:[%s359 + $0x38] sm:$0xff]
        %v368 = vld [vmem:[%s359 + $0x40] sm:$0xff]
        %v369 = vld [vmem:[%s359 + $0x48] sm:$0xff]
        %v370 = vld [vmem:[%s359 + $0x50] sm:$0xff]
        %v371 = vld [vmem:[%s359 + $0x58] sm:$0xff]
        %s372 = scalar_lea.vmem %s2, 1
        %v373 = vld [vmem:[%s372] sm:$0x1]
        %v375 = vlaneseq
        %v376 = vshrl.u32 %v375, 7
        %v377 = vsub.s32 0, %v376
        %v378 = vrot.slane %v373, %v377
        %v381 = vsel %vm223, %v357, 0
        %v384 = vsel %vm223, %v358, 0
        %386 = vmatprep.subr.mxu0 0.0
        %387 = vmatpush1.msra.mxu0 %v360
        %388 = vmatprep.subr.mxu0 0.0
        %389 = vmatpush1.msra.mxu0 %v361
        %390 = vmatprep.subr.mxu0 0.0
        %391 = vmatpush1.msra.mxu0 %v362
        %392 = vmatprep.subr.mxu0 0.0
        %393 = vmatpush1.msra.mxu0 %v363
        %394 = vmatprep.subr.mxu0 0.0
        %395 = vmatpush1.msra.mxu0 %v364
        %396 = vmatprep.subr.mxu0 0.0
        %397 = vmatpush1.msra.mxu0 %v365
        %398 = vmatprep.subr.mxu0 0.0
        %399 = vmatpush1.msra.mxu0 %v366
        %400 = vmatprep.subr.mxu0 0.0
        %401 = vmatpush1.msra.mxu0 %v367
        %402 = vmatprep.subr.mxu0 0.0
        %403 = vmatpush1.msra.mxu0 %v368
        %404 = vmatprep.subr.mxu0 0.0
        %405 = vmatpush1.msra.mxu0 %v369
        %406 = vmatprep.subr.mxu0 0.0
        %407 = vmatpush1.msra.mxu0 %v370
        %408 = vmatprep.subr.mxu0 0.0
        %409 = vmatpush1.msra.mxu0 %v371
        %410 = vmatprep.subr.mxu0 0.0
        %411 = vmatpush1.msra.mxu0 0.0
        %412 = vmatprep.subr.mxu0 0.0
        %413 = vmatpush1.msra.mxu0 0.0
        %414 = vmatprep.subr.mxu0 0.0
        %415 = vmatpush1.msra.mxu0 0.0
        %416 = vmatprep.subr.mxu0 0.0
        %417 = vmatpush1.msra.mxu0 0.0
        %418 = vmatprep.subr.mxu0 0.0
        %419 = vmatpush1.msra.mxu0 0.0
        %420 = vmatprep.subr.mxu0 0.0
        %421 = vmatpush1.msra.mxu0 0.0
        %422 = vmatprep.subr.mxu0 0.0
        %423 = vmatpush1.msra.mxu0 0.0
        %424 = vmatprep.subr.mxu0 0.0
        %425 = vmatpush1.msra.mxu0 0.0
        %426 = vmatprep.subr.mxu0 0.0
        %427 = vmatpush1.msra.mxu0 0.0
        %428 = vmatprep.subr.mxu0 0.0
        %429 = vmatpush1.msra.mxu0 0.0
        %430 = vmatprep.subr.mxu0 0.0
        %431 = vmatpush1.msra.mxu0 0.0
        %432 = vmatprep.subr.mxu0 0.0
        %433 = vmatpush1.msra.mxu0 0.0
        %434 = vmatprep.subr.mxu0 0.0
        %435 = vmatpush1.msra.mxu0 0.0
        %436 = vmatprep.subr.mxu0 0.0
        %437 = vmatpush1.msra.mxu0 0.0
        %438 = vmatprep.subr.mxu0 0.0
        %439 = vmatpush1.msra.mxu0 0.0
        %440 = vmatprep.subr.mxu0 0.0
        %441 = vmatpush1.msra.mxu0 0.0
        %442 = vmatprep.subr.mxu0 0.0
        %443 = vmatpush1.msra.mxu0 0.0
        %444 = vmatprep.subr.mxu0 0.0
        %445 = vmatpush1.msra.mxu0 0.0
        %446 = vmatprep.subr.mxu0 0.0
        %447 = vmatpush1.msra.mxu0 0.0
        %448 = vmatprep.subr.mxu0 0.0
        %449 = vmatpush1.msra.mxu0 0.0
        %450 = vmatprep.mubr.f32.mxu0 0.0
        %451 = vmatmul.mubr.f32.gmra.mrb[0].mxu0 %v381
        %v452 = vpop.f32.mrb[0].mxu0
        %v453 = vadd.f32 %v378, %v452
        %v454 = vpop.f32.mrb[0].mxu0
        %455 = vmatprep.mubr.f32.mxu0 0.0
        %456 = vmatmul.mubr.f32.gmra.mrb[0].mxu0 %v384
        %v457 = vpop.f32.mrb[0].mxu0
        %v458 = vadd.f32 %v378, %v457
        %v459 = vpop.f32.mrb[0].mxu0
        %460 = vdwg.mxu0
        %v461 = vxor.u32 %v453, 2147483648
        %v462 = vxor.u32 %v458, 2147483648
        %v463 = vmul.f32 %v461, 1.442695
        %v464 = vpow.pop %v463
        %v465 = vmul.f32 %v462, 1.442695
        %v466 = vpow.pop %v465
        %v467 = vadd.f32 %v464, 1.0
        %v468 = vadd.f32 %v466, 1.0
        %v469 = vrcp.pop %v467
        %v470 = vmul.f32 1.0, %v469
        %v471 = vrcp.pop %v468
        %v472 = vmul.f32 1.0, %v471
        %475 = vrot.lane.b32.xlu0 %v470, 96
        %v476 = vpop.permute.xlu0 %475
        %477 = vrot.lane.b32.xlu0 %v472, 96
        %v478 = vpop.permute.xlu0 %477
        %v481 = vmul.f32 %v453, %v476
        %v482 = vmul.f32 %v458, %v478
        %v483 = vadd.f32 %v335, %v481
        %v484 = vadd.f32 %v336, %v482
        %v485 = vmul.f32 %v483, 0.70710677
        %v486 = vmul.f32 %v484, 0.70710677
        %487 = vst.msk [vmem:[%s163] sm:$0xff] %vm174, %v485
        %488 = vst.msk [vmem:[%s163 + $0x8] sm:$0xff] %vm174, %v486
        %s489 = sand.u32 %s93, 1
        %s490 = scalar_lea.sflag [#allocation4], %s489
        %s491 = sand.u32 %s93, 1
        %s492 = smul.addr %s491, 16
        %s493 = scalar_lea.vmem [#allocation3], %s492
        // Predicated region
        $region33: #{stacked_cnn_forward_pallas.1} parent=31 // pred_check
          %p494 = pneg %p103
        $region34: #{stacked_cnn_forward_pallas.1} parent=31 // pred_check_branch
          %496 = sbr.rel (%p494) target = $region36
        $region35: #{stacked_cnn_forward_pallas.1} parent=31 // pred_region
          %s498 = ssub.s32 256, 256
          %499 = vsyncadd %s490, %s498
          %s500 = smul.addr %s17, 2
          %s501 = smul.addr %s500, 128
          %s502 = scalar_lea.hbm %s3, %s501
          %s503 = sshll.u32 %s493, 4
          %s504 = int_to_ptr.vmem [resolvable:$true] %s503
          %509 = dma.vmem_to_hbm [thread:$0]  %s504, 256, %s502, %s490, 128, 128, 8
        $region36: #{stacked_cnn_forward_pallas.1} parent=31 // pred_fallthru
          _
      $region32: #{stacked_cnn_forward_pallas.1} parent=5 // pred_fallthru
        _
      %p510 = scmp.le.s32.totalorder 2, %s12
      // Predicated region
      $region37: #{stacked_cnn_forward_pallas.1} parent=5 // pred_check
        %p511 = pneg %p510
      $region38: #{stacked_cnn_forward_pallas.1} parent=5 // pred_check_branch
        %513 = sbr.rel (%p511) target = $region40
      $region39: #{stacked_cnn_forward_pallas.1} parent=5 // pred_region
        %s514 = ssub.s32 %s12, 2
        // Predicated region
        $region41: #{stacked_cnn_forward_pallas.1} parent=39 // pred_check
          %p515 = pneg %p109
        $region42: #{stacked_cnn_forward_pallas.1} parent=39 // pred_check_branch
          %517 = sbr.rel (%p515) target = $region44
        $region43: #{stacked_cnn_forward_pallas.1} parent=39 // pred_region
          %s518 = sand.u32 %s94, 1
          %s519 = scalar_lea.sflag [#allocation4], %s518
          %s520 = sand.u32 %s94, 1
          %s521 = smul.addr %s520, 16
          %s522 = scalar_lea.vmem [#allocation3], %s521
          %523 = dma.done %s519, 256
        $region44: #{stacked_cnn_forward_pallas.1} parent=39 // pred_fallthru
          _
      $region40: #{stacked_cnn_forward_pallas.1} parent=5 // pred_fallthru
        _
    $region6: #{stacked_cnn_forward_pallas.1} parent=1 // loop_footer
      %s16 = sadd.s32 1, %s12
    $region7: #{stacked_cnn_forward_pallas.1} parent=1 // loop_footer_branch
      %11 = sbr.rel target = $region3
    $region8: #{stacked_cnn_forward_pallas.1} parent=1 // loop_exit
      _
    %524 = vsyncpa [#allocation4], 1
    %s525 = scalar_lea.sflag [#allocation4], 1
    %526 = vsyncpa %s525, 1

</llo_original>
